<compile_context>
chip_gen: v7x
topology: tpu7x:2x2x1
jax: 0.10.0
libtpu: 0.0.40
codegen_flags: <defaults>
</compile_context>

<pallas_src>
import functools

import numpy as np
import jax
import jax.numpy as jnp
from jax import lax
from jax.experimental import pallas as pl
from jax.experimental.pallas import tpu as pltpu


# ---------------------------------------------------------------------------
# Pallas kernels
# ---------------------------------------------------------------------------
def _conv_im2col_kernel(p_ref, w_ref, o_ref):
    # p_ref: (1, TM, K) bf16   im2col patches (bias column folded in)
    # w_ref: (K, Cout)  bf16   packed conv weights (+ bias row)
    # o_ref: (1, TM, Cout)     conv output rows for this (batch, row-tile)
    o_ref[0] = jnp.dot(p_ref[0], w_ref[...],
                       preferred_element_type=jnp.float32).astype(o_ref.dtype)


def _upsample_kernel(y_ref, ah_ref, mw_ref, o_ref):
    # y_ref : (1, H, W*Cout)        bf16  conv output, channels packed into lanes
    # ah_ref: (Ho, H)               bf16  bilinear matrix along H (align_corners)
    # mw_ref: (W*Cout, Wo*Cout)     bf16  kron(A_w^T, I_Cout) (bilinear along W)
    # o_ref : (1, Ho, Wo*Cout)            lane-dense output slab
    t = jnp.dot(ah_ref[...], y_ref[0], preferred_element_type=jnp.float32)
    out = jnp.dot(t.astype(jnp.bfloat16), mw_ref[...],
                  preferred_element_type=jnp.float32)
    o_ref[0] = out.astype(o_ref.dtype)


# ---------------------------------------------------------------------------
# Glue helpers (numpy / plain JAX)
# ---------------------------------------------------------------------------
def _bilinear_matrix_np(n_in, n_out):
    """(n_out, n_in) bilinear interpolation matrix, align_corners=True."""
    if n_in == 1:
        return np.ones((n_out, 1), np.float32)
    src = np.arange(n_out) * (n_in - 1) / (n_out - 1)
    lo = np.clip(np.floor(src).astype(np.int64), 0, n_in - 2)
    frac = (src - lo).astype(np.float32)
    m = np.zeros((n_out, n_in), np.float32)
    m[np.arange(n_out), lo] += 1.0 - frac
    m[np.arange(n_out), lo + 1] += frac
    return m


@functools.partial(jax.jit, static_argnames=("scale_factor",))
def segmentation_head_2d(x, weight, bias, scale_factor=(2, 2)):
    """x: (B, Cin, H, W) NCHW; weight: (Cout, Cin, KH, KW); bias: (Cout,)."""
    B, Cin, H, W = x.shape
    Cout, _, KH, KW = weight.shape
    pad = KH // 2
    Ho, Wo = H * scale_factor[0], W * scale_factor[1]
    K = KH * KW * Cin + 1          # +1 = folded bias column
    HW = H * W
    cdt = jnp.bfloat16             # matmul operand dtype (f32 accumulation)

    # ---- glue: im2col patches with bias folded in --------------------------
    x_nhwc = jnp.transpose(x, (0, 2, 3, 1))                       # (B,H,W,Cin)
    x_pad = jnp.pad(x_nhwc, ((0, 0), (pad, pad), (pad, pad), (0, 0)))
    slabs = [x_pad[:, kh:kh + H, kw:kw + W, :]
             for kh in range(KH) for kw in range(KW)]
    ones = jnp.ones((B, H, W, 1), x.dtype)
    patches = jnp.concatenate(slabs + [ones], axis=-1)            # (B,H,W,K)
    patches = patches.reshape(B, HW, K).astype(cdt)

    # packed conv weights: (K, Cout); last row is the bias
    wmat = jnp.transpose(weight, (2, 3, 1, 0)).reshape(KH * KW * Cin, Cout)
    wmat = jnp.concatenate([wmat, bias.reshape(1, Cout)], axis=0).astype(cdt)

    # separable bilinear (align_corners=True) matrices, built as constants
    a_h = jnp.asarray(_bilinear_matrix_np(H, Ho), cdt)            # (Ho, H)
    m_w = jnp.asarray(
        np.kron(_bilinear_matrix_np(W, Wo).T,
                np.eye(Cout, dtype=np.float32)), cdt)             # (W*C, Wo*C)

    # ---- kernel 1: fused conv3x3 + bias as one im2col matmul ---------------
    TM = min(HW, 512)              # row tile; bounds per-step VMEM at large H*W
    conv_flat = pl.pallas_call(
        _conv_im2col_kernel,
        out_shape=jax.ShapeDtypeStruct((B, HW, Cout), cdt),
        grid=(B, pl.cdiv(HW, TM)),
        in_specs=[
            pl.BlockSpec((1, TM, K), lambda b, r: (b, r, 0)),
            pl.BlockSpec((K, Cout), lambda b, r: (0, 0)),
        ],
        out_specs=pl.BlockSpec((1, TM, Cout), lambda b, r: (b, r, 0)),
        compiler_params=pltpu.CompilerParams(
            dimension_semantics=("parallel", "parallel")),
    )(patches, wmat)

    # free contiguous relayout: (B, H*W, Cout) -> (B, H, W*Cout)
    y = conv_flat.reshape(B, H, W * Cout)

    # ---- kernel 2: separable bilinear x2, lane-dense output ----------------
    up = pl.pallas_call(
        _upsample_kernel,
        out_shape=jax.ShapeDtypeStruct((B, Ho, Wo * Cout), x.dtype),
        grid=(B,),
        in_specs=[
            pl.BlockSpec((1, H, W * Cout), lambda b: (b, 0, 0)),
            pl.BlockSpec((Ho, H), lambda b: (0, 0)),
            pl.BlockSpec((W * Cout, Wo * Cout), lambda b: (0, 0)),
        ],
        out_specs=pl.BlockSpec((1, Ho, Wo * Cout), lambda b: (b, 0, 0)),
        compiler_params=pltpu.CompilerParams(
            dimension_semantics=("parallel",)),
    )(y, a_h, m_w)

    # back to NCHW
    return jnp.transpose(up.reshape(B, Ho, Wo, Cout), (0, 3, 1, 2))


# ---------------------------------------------------------------------------
# Pure-JAX reference (f32) for a sanity check
# ---------------------------------------------------------------------------
def _reference(x, weight, bias, scale_factor=(2, 2)):
    conv = lax.conv_general_dilated(
        x, weight, window_strides=(1, 1), padding="SAME",
        dimension_numbers=("NCHW", "OIHW", "NCHW"))
    conv = conv + bias[None, :, None, None]
    _, _, H, W = conv.shape
    ah = jnp.asarray(_bilinear_matrix_np(H, H * scale_factor[0]))
    aw = jnp.asarray(_bilinear_matrix_np(W, W * scale_factor[1]))
    return jnp.einsum("ph,qw,bchw->bcpq", ah, aw, conv)


if __name__ == "__main__":
    B, Cin, Cout, H, W = 2, 4, 8, 16, 16
    ksize = 3

    key = jax.random.PRNGKey(0)
    kx, kw, kb = jax.random.split(key, 3)

    # deterministic parameter init (kaiming-uniform-style bounds, like nn.Conv2d)
    fan_in = Cin * ksize * ksize
    bound = 1.0 / np.sqrt(fan_in)
    weight = jax.random.uniform(kw, (Cout, Cin, ksize, ksize),
                                jnp.float32, -bound, bound)
    bias = jax.random.uniform(kb, (Cout,), jnp.float32, -bound, bound)
    x = jax.random.normal(kx, (B, Cin, H, W), jnp.float32)

    out = segmentation_head_2d(x, weight, bias, scale_factor=(2, 2))
    out = jax.block_until_ready(out)

    ref = jax.block_until_ready(_reference(x, weight, bias, (2, 2)))
    assert out.shape == (B, Cout, 2 * H, 2 * W), out.shape
    # bf16 matmul operands with f32 accumulation -> loosened tolerance
    np.testing.assert_allclose(np.asarray(out), np.asarray(ref),
                               rtol=2e-2, atol=2e-2)

    print("KERNEL_OK")
</pallas_src>

<mosaic_0001>
module attributes {stable_mosaic.version = 11 : i64} {
  func.func @_conv_im2col_kernel(%arg0: i32, %arg1: i32, %arg2: memref<1x256x37xbf16, #tpu.memory_space<vmem>>, %arg3: memref<37x8xbf16, #tpu.memory_space<vmem>>, %arg4: memref<1x256x8xbf16, #tpu.memory_space<vmem>>) attributes {dimension_semantics = [#tpu.dimension_semantics<parallel>, #tpu.dimension_semantics<parallel>], iteration_bounds = array<i64: 2, 1>, scalar_prefetch = 0 : i64, scratch_operands = 0 : i64, tpu.core_type = #tpu.core_type<tc>, window_params = [{transform_indices = @transform_0, window_bounds = array<i64: 1, 256, 37>}, {pipeline_mode = #tpu.pipeline_mode<synchronous>, transform_indices = @transform_1, window_bounds = array<i64: 37, 8>}, {transform_indices = @transform_2, window_bounds = array<i64: 1, 256, 8>}]} {
    %c0 = arith.constant 0 : index
    %c0_0 = arith.constant 0 : index
    %c0_1 = arith.constant 0 : index
    %0 = vector.load %arg2[%c0, %c0_0, %c0_1] : memref<1x256x37xbf16, #tpu.memory_space<vmem>>, vector<1x256x37xbf16>
    %1 = vector.shape_cast %0 : vector<1x256x37xbf16> to vector<256x37xbf16>
    %c0_2 = arith.constant 0 : index
    %c0_3 = arith.constant 0 : index
    %2 = vector.load %arg3[%c0_2, %c0_3] : memref<37x8xbf16, #tpu.memory_space<vmem>>, vector<37x8xbf16>
    %cst = arith.constant dense<0.000000e+00> : vector<256x8xf32>
    %3 = tpu.matmul %1, %2, %cst {dimension_numbers = #tpu.dot_dimension_numbers<[1], [0], [0], [1], [0, 0, 1, 1], [], []>} : vector<256x37xbf16>, vector<37x8xbf16>, vector<256x8xf32> -> vector<256x8xf32>
    %4 = arith.truncf %3 : vector<256x8xf32> to vector<256x8xbf16>
    %c0_4 = arith.constant 0 : index
    %c0_5 = arith.constant 0 : index
    %c0_6 = arith.constant 0 : index
    %5 = vector.load %arg4[%c0_4, %c0_5, %c0_6] : memref<1x256x8xbf16, #tpu.memory_space<vmem>>, vector<1x256x8xbf16>
    %6 = vector.shape_cast %5 : vector<1x256x8xbf16> to vector<256x8xbf16>
    %7 = vector.shape_cast %4 : vector<256x8xbf16> to vector<1x256x8xbf16>
    tpu.vector_store %arg4[%c0_4, %c0_5, %c0_6], %7 {strides = array<i32>} : memref<1x256x8xbf16, #tpu.memory_space<vmem>>, vector<1x256x8xbf16>,
    return
  }
  func.func @transform_0(%arg0: i32, %arg1: i32) -> (i32, i32, i32) {
    %c0_i32 = arith.constant 0 : i32
    %c0_i32_0 = arith.constant 0 : i32
    return %arg0, %arg1, %c0_i32 : i32, i32, i32
  }
  func.func @transform_1(%arg0: i32, %arg1: i32) -> (i32, i32) {
    %c0_i32 = arith.constant 0 : i32
    %c0_i32_0 = arith.constant 0 : i32
    %c0_i32_1 = arith.constant 0 : i32
    return %c0_i32, %c0_i32_0 : i32, i32
  }
  func.func @transform_2(%arg0: i32, %arg1: i32) -> (i32, i32, i32) {
    %c0_i32 = arith.constant 0 : i32
    %c0_i32_0 = arith.constant 0 : i32
    return %arg0, %arg1, %c0_i32 : i32, i32, i32
  }
}

module attributes {stable_mosaic.version = 11 : i64} {
  func.func @_upsample_kernel(%arg0: i32, %arg1: memref<1x16x128xbf16, #tpu.memory_space<vmem>>, %arg2: memref<32x16xbf16, #tpu.memory_space<vmem>>, %arg3: memref<128x256xbf16, #tpu.memory_space<vmem>>, %arg4: memref<1x32x256xf32, #tpu.memory_space<vmem>>) attributes {dimension_semantics = [#tpu.dimension_semantics<parallel>], iteration_bounds = array<i64: 2>, scalar_prefetch = 0 : i64, scratch_operands = 0 : i64, tpu.core_type = #tpu.core_type<tc>, window_params = [{transform_indices = @transform_0, window_bounds = array<i64: 1, 16, 128>}, {pipeline_mode = #tpu.pipeline_mode<synchronous>, transform_indices = @transform_1, window_bounds = array<i64: 32, 16>}, {pipeline_mode = #tpu.pipeline_mode<synchronous>, transform_indices = @transform_2, window_bounds = array<i64: 128, 256>}, {transform_indices = @transform_3, window_bounds = array<i64: 1, 32, 256>}]} {
    %c0 = arith.constant 0 : index
    %c0_0 = arith.constant 0 : index
    %0 = vector.load %arg2[%c0, %c0_0] : memref<32x16xbf16, #tpu.memory_space<vmem>>, vector<32x16xbf16>
    %c0_1 = arith.constant 0 : index
    %c0_2 = arith.constant 0 : index
    %c0_3 = arith.constant 0 : index
    %1 = vector.load %arg1[%c0_1, %c0_2, %c0_3] : memref<1x16x128xbf16, #tpu.memory_space<vmem>>, vector<1x16x128xbf16>
    %2 = vector.shape_cast %1 : vector<1x16x128xbf16> to vector<16x128xbf16>
    %cst = arith.constant dense<0.000000e+00> : vector<32x128xf32>
    %3 = tpu.matmul %0, %2, %cst {dimension_numbers = #tpu.dot_dimension_numbers<[1], [0], [0], [1], [0, 0, 1, 1], [], []>} : vector<32x16xbf16>, vector<16x128xbf16>, vector<32x128xf32> -> vector<32x128xf32>
    %4 = arith.truncf %3 : vector<32x128xf32> to vector<32x128xbf16>
    %c0_4 = arith.constant 0 : index
    %c0_5 = arith.constant 0 : index
    %5 = vector.load %arg3[%c0_4, %c0_5] : memref<128x256xbf16, #tpu.memory_space<vmem>>, vector<128x256xbf16>
    %cst_6 = arith.constant dense<0.000000e+00> : vector<32x256xf32>
    %6 = tpu.matmul %4, %5, %cst_6 {dimension_numbers = #tpu.dot_dimension_numbers<[1], [0], [0], [1], [0, 0, 1, 1], [], []>} : vector<32x128xbf16>, vector<128x256xbf16>, vector<32x256xf32> -> vector<32x256xf32>
    %c0_7 = arith.constant 0 : index
    %c0_8 = arith.constant 0 : index
    %c0_9 = arith.constant 0 : index
    %7 = vector.load %arg4[%c0_7, %c0_8, %c0_9] : memref<1x32x256xf32, #tpu.memory_space<vmem>>, vector<1x32x256xf32>
    %8 = vector.shape_cast %7 : vector<1x32x256xf32> to vector<32x256xf32>
    %9 = vector.shape_cast %6 : vector<32x256xf32> to vector<1x32x256xf32>
    tpu.vector_store %arg4[%c0_7, %c0_8, %c0_9], %9 {strides = array<i32>} : memref<1x32x256xf32, #tpu.memory_space<vmem>>, vector<1x32x256xf32>,
    return
  }
  func.func @transform_0(%arg0: i32) -> (i32, i32, i32) {
    %c0_i32 = arith.constant 0 : i32
    %c0_i32_0 = arith.constant 0 : i32
    %c0_i32_1 = arith.constant 0 : i32
    return %arg0, %c0_i32, %c0_i32_0 : i32, i32, i32
  }
  func.func @transform_1(%arg0: i32) -> (i32, i32) {
    %c0_i32 = arith.constant 0 : i32
    %c0_i32_0 = arith.constant 0 : i32
    %c0_i32_1 = arith.constant 0 : i32
    return %c0_i32, %c0_i32_0 : i32, i32
  }
  func.func @transform_2(%arg0: i32) -> (i32, i32) {
    %c0_i32 = arith.constant 0 : i32
    %c0_i32_0 = arith.constant 0 : i32
    %c0_i32_1 = arith.constant 0 : i32
    return %c0_i32, %c0_i32_0 : i32, i32
  }
  func.func @transform_3(%arg0: i32) -> (i32, i32, i32) {
    %c0_i32 = arith.constant 0 : i32
    %c0_i32_0 = arith.constant 0 : i32
    %c0_i32_1 = arith.constant 0 : i32
    return %arg0, %c0_i32, %c0_i32_0 : i32, i32, i32
  }
}

</mosaic_0001>

<llo_original>
// kernel: segmentation_head_2d.2
$region0: #{segmentation_head_2d.2}
  #allocation0 [shape = 'u32[]', space=smem, size = 0x4, offset = 0x4, fixed_abs, tag = 'smem constant byte address 0x4 - core index']
  #allocation1 [shape = 'u32[144,128]{1,0:T(1,128)}', space=vmem, size = 0x12000, scoped, tag = 'internal scratch']
  %s0 = inlined_call_operand.vmem [shape: bf16[2,256,37], index: 0, kind: input, shape index: {}]
  %s1 = inlined_call_operand.vmem [shape: bf16[37,8], index: 1, kind: input, shape index: {}]
  %s2 = inlined_call_operand.vmem [shape: bf16[2,256,8], index: 2, kind: output, shape index: {}]
  %s3 = sld [smem:[#allocation0]]
  $region41: #{segmentation_head_2d.2} parent=0
    _
  %s5 = ssub.s32 1, %s3
  %s6 = scalar_select 0, %s5, %s3
  loop: start=0, step=1, limit=4
  $region2: #{segmentation_head_2d.2} parent=0 // loop_pre_header
    _
  $region3: #{segmentation_head_2d.2} parent=0 // loop_header
    %s8 = sphi 0, %s12
    %p9 = scmp.ge.s32.totalorder %s8, 4
    %s15 = sphi 0, %s27
    %s16 = sphi 0, %s23
    %s17 = sphi 0, %s15
    %s18 = sphi 0, %s16
    %s19 = sphi 0, %s17
    %s20 = sphi 0, %s18
    %s32 = sphi 0, %s34
    %s35 = sphi 0, %s32
    %s36 = sphi 0, %s35
    %s52 = sphi 0, %s36
    %s56 = sphi 0, %s56
    %s58 = sphi 0, %s56
    %s59 = sphi 0, %s58
    %s73 = sphi 0, %s59
    %s81 = sphi 0, %s83
    %s84 = sphi 0, %s81
    %s85 = sphi 0, %s84
    %s101 = sphi 0, %s85
  $region4: #{segmentation_head_2d.2} parent=0 // loop_header_branch
    %11 = sbr.rel (%p9) target = $region8
  $region5: #{segmentation_head_2d.2} parent=0 // loop_body
    %s13 = ssub.s32 %s8, 1
    %s14 = ssub.s32 %s8, 2
    %s21 = sadd.s32 1, %s16
    %p22 = scmp.ge.s32.totalorder %s21, 1
    %s23 = scalar_select %p22, 0, %s21
    %s24 = sadd.s32 1, %s15
    %s25 = scalar_select %p22, %s24, %s15
    %p26 = scmp.ge.s32.totalorder %s25, 2
    %s27 = scalar_select %p26, 0, %s25
    %s28 = ssub.s32 %s15, %s27
    %s29 = ssub.s32 %s16, %s23
    %s30 = sor.u32 %s28, %s29
    %p31 = scmp.eq.s32.totalorder %s30, 0
    %s33 = sadd.s32 %s32, 1
    %s34 = scalar_select %p31, %s32, %s33
    %p37 = pneg %p31
    %p38 = scmp.eq.s32.totalorder %s8, 1
    %p39 = por %p37, %p38
    %p40 = scmp.ne.s32.totalorder %s32, %s35
    %p41 = scmp.eq.s32.totalorder %s8, 0
    %p42 = por %p40, %p41
    %p43 = scmp.ne.s32.totalorder %s32, %s35
    %p44 = scmp.eq.s32.totalorder %s13, 1
    %p45 = por %p43, %p44
    %p46 = scmp.ne.s32.totalorder %s35, %s36
    %p47 = scmp.eq.s32.totalorder %s13, 0
    %p48 = por %p46, %p47
    %p49 = scmp.ne.s32.totalorder %s35, %s36
    %p50 = scmp.eq.s32.totalorder %s14, 1
    %p51 = por %p49, %p50
    %p53 = scmp.ne.s32.totalorder %s36, %s52
    %p54 = scmp.eq.s32.totalorder %s14, 0
    %p55 = por %p53, %p54
    %s57 = sadd.s32 %s56, 1
    %p60 = scmp.eq.s32.totalorder %s8, 1
    %p61 = scmp.ne.s32.totalorder %s56, %s58
    %p62 = scmp.eq.s32.totalorder %s8, 0
    %p63 = por %p61, %p62
    %p64 = scmp.ne.s32.totalorder %s56, %s58
    %p65 = scmp.eq.s32.totalorder %s13, 1
    %p66 = por %p64, %p65
    %p67 = scmp.ne.s32.totalorder %s58, %s59
    %p68 = scmp.eq.s32.totalorder %s13, 0
    %p69 = por %p67, %p68
    %p70 = scmp.ne.s32.totalorder %s58, %s59
    %p71 = scmp.eq.s32.totalorder %s14, 1
    %p72 = por %p70, %p71
    %p74 = scmp.ne.s32.totalorder %s59, %s73
    %p75 = scmp.eq.s32.totalorder %s14, 0
    %p76 = por %p74, %p75
    %s77 = ssub.s32 %s15, %s27
    %s78 = ssub.s32 %s16, %s23
    %s79 = sor.u32 %s77, %s78
    %p80 = scmp.eq.s32.totalorder %s79, 0
    %s82 = sadd.s32 %s81, 1
    %s83 = scalar_select %p80, %s81, %s82
    %p86 = pneg %p80
    %p87 = scmp.eq.s32.totalorder %s8, 1
    %p88 = por %p86, %p87
    %p89 = scmp.ne.s32.totalorder %s81, %s84
    %p90 = scmp.eq.s32.totalorder %s8, 0
    %p91 = por %p89, %p90
    %p92 = scmp.ne.s32.totalorder %s81, %s84
    %p93 = scmp.eq.s32.totalorder %s13, 1
    %p94 = por %p92, %p93
    %p95 = scmp.ne.s32.totalorder %s84, %s85
    %p96 = scmp.eq.s32.totalorder %s13, 0
    %p97 = por %p95, %p96
    %p98 = scmp.ne.s32.totalorder %s84, %s85
    %p99 = scmp.eq.s32.totalorder %s14, 1
    %p100 = por %p98, %p99
    %p102 = scmp.ne.s32.totalorder %s85, %s101
    %p103 = scmp.eq.s32.totalorder %s14, 0
    %p104 = por %p102, %p103
    %p105 = scmp.le.s32.totalorder 1, %s8
    %p106 = scmp.lt.s32.totalorder %s8, 3
    %p107 = pnand %p105, %p106
    %p108 = pneg %p107
    // Predicated region
    $region9: #{segmentation_head_2d.2} parent=5 // pred_check
      _
    $region10: #{segmentation_head_2d.2} parent=5 // pred_check_branch
      %110 = sbr.rel (%p107) target = $region12
    $region11: #{segmentation_head_2d.2} parent=5 // pred_region
      %s111 = ssub.s32 %s8, 1
      // Predicated region
      $region13: #{segmentation_head_2d.2} parent=11 // pred_check
        %p112 = pneg %p69
      $region14: #{segmentation_head_2d.2} parent=11 // pred_check_branch
        %114 = sbr.rel (%p112) target = $region16
      $region15: #{segmentation_head_2d.2} parent=11 // pred_region
        _
      $region16: #{segmentation_head_2d.2} parent=11 // pred_fallthru
        _
    $region12: #{segmentation_head_2d.2} parent=5 // pred_fallthru
      _
    %p115 = scmp.lt.s32.totalorder %s8, 2
    // Predicated region
    $region17: #{segmentation_head_2d.2} parent=5 // pred_check
      %p116 = pneg %p115
    $region18: #{segmentation_head_2d.2} parent=5 // pred_check_branch
      %118 = sbr.rel (%p116) target = $region20
    $region19: #{segmentation_head_2d.2} parent=5 // pred_region
      // Predicated region
      $region21: #{segmentation_head_2d.2} parent=19 // pred_check
        %p119 = pneg %p42
      $region22: #{segmentation_head_2d.2} parent=19 // pred_check_branch
        %121 = sbr.rel (%p119) target = $region24
      $region23: #{segmentation_head_2d.2} parent=19 // pred_region
        %s122 = smul.u32 32, %s16
        %p123 = scmp.lt.s32.totalorder %s15, 1
        %s124 = scalar_select %p123, %s15, 1
        %p125 = scmp.lt.s32.totalorder %s122, 31
        %s126 = scalar_select %p125, %s122, 31
        %s127 = smul.addr %s124, 32
        %s128 = sadd.s32 %s126, %s127
        %s129 = smul.addr %s128, 4
        %s130 = scalar_lea.vmem %s0, %s129
        %s131 = smul.u32 32, %s16
      $region24: #{segmentation_head_2d.2} parent=19 // pred_fallthru
        _
    $region20: #{segmentation_head_2d.2} parent=5 // pred_fallthru
      _
    %p132 = scmp.le.s32.totalorder 1, %s8
    %p133 = scmp.lt.s32.totalorder %s8, 3
    %p134 = pnand %p132, %p133
    %p135 = pneg %p134
    // Predicated region
    $region25: #{segmentation_head_2d.2} parent=5 // pred_check
      _
    $region26: #{segmentation_head_2d.2} parent=5 // pred_check_branch
      %137 = sbr.rel (%p134) target = $region28
    $region27: #{segmentation_head_2d.2} parent=5 // pred_region
      %s138 = ssub.s32 %s8, 1
      %s139 = smul.u32 32, %s18
      %p140 = scmp.lt.s32.totalorder %s17, 1
      %s141 = scalar_select %p140, %s17, 1
      %p142 = scmp.lt.s32.totalorder %s139, 31
      %s143 = scalar_select %p142, %s139, 31
      %s144 = smul.addr %s141, 32
      %s145 = sadd.s32 %s143, %s144
      %s146 = smul.addr %s145, 4
      %s147 = scalar_lea.vmem %s0, %s146
      %p148 = pneg %p48
      %p149 = pneg %p45
      %p150 = pneg %p69
      %p151 = pneg %p66
      %p152 = pneg %p97
      %p153 = pneg %p94
      %s154 = smul.u32 32, %s18
      %p155 = scmp.lt.s32.totalorder %s17, 1
      %s156 = scalar_select %p155, %s17, 1
      %p157 = scmp.lt.s32.totalorder %s154, 31
      %s158 = scalar_select %p157, %s154, 31
      %s159 = smul.addr %s156, 32
      %s160 = sadd.s32 %s158, %s159
      %s161 = smul.addr %s160, 4
      %s162 = scalar_lea.vmem %s2, %s161
      %s163 = smul.u32 32, %s18
      %p164 = scmp.lt.s32.totalorder %s17, 1
      %s165 = scalar_select %p164, %s17, 1
      %p166 = scmp.lt.s32.totalorder %s163, 31
      %s167 = scalar_select %p166, %s163, 31
      %s168 = smul.addr %s165, 32
      %s169 = sadd.s32 %s167, %s168
      %s170 = smul.addr %s169, 4
      %s171 = scalar_lea.vmem %s0, %s170
      %s172 = smul.u32 32, %s18
      %s173 = smul.u32 32, %s18
      %p174 = scmp.lt.s32.totalorder %s17, 1
      %s175 = scalar_select %p174, %s17, 1
      %p176 = scmp.lt.s32.totalorder %s173, 31
      %s177 = scalar_select %p176, %s173, 31
      %s178 = smul.addr %s175, 32
      %s179 = sadd.s32 %s177, %s178
      %s180 = smul.addr %s179, 4
      %s181 = scalar_lea.vmem %s2, %s180
      %s182 = smul.u32 32, %s18
      %v184 = vld [vmem:[%s171] sm:$0xf]
      %v185 = vld [vmem:[%s171 + $0x4] sm:$0xf]
      %v186 = vld [vmem:[%s171 + $0x8] sm:$0xf]
      %v187 = vld [vmem:[%s171 + $0xc] sm:$0xf]
      %v188 = vld [vmem:[%s171 + $0x10] sm:$0xf]
      %v189 = vld [vmem:[%s171 + $0x14] sm:$0xf]
      %v190 = vld [vmem:[%s171 + $0x18] sm:$0xf]
      %v191 = vld [vmem:[%s171 + $0x1c] sm:$0xf]
      %v192 = vld [vmem:[%s171 + $0x20] sm:$0xf]
      %v193 = vld [vmem:[%s171 + $0x24] sm:$0xf]
      %v194 = vld [vmem:[%s171 + $0x28] sm:$0xf]
      %v195 = vld [vmem:[%s171 + $0x2c] sm:$0xf]
      %v196 = vld [vmem:[%s171 + $0x30] sm:$0xf]
      %v197 = vld [vmem:[%s171 + $0x34] sm:$0xf]
      %v198 = vld [vmem:[%s171 + $0x38] sm:$0xf]
      %v199 = vld [vmem:[%s171 + $0x3c] sm:$0xf]
      %v200 = vld [vmem:[%s171 + $0x40] sm:$0xf]
      %v201 = vld [vmem:[%s171 + $0x44] sm:$0xf]
      %v202 = vld [vmem:[%s171 + $0x48] sm:$0xf]
      %v203 = vld [vmem:[%s171 + $0x4c] sm:$0xf]
      %v204 = vld [vmem:[%s171 + $0x50] sm:$0xf]
      %v205 = vld [vmem:[%s171 + $0x54] sm:$0xf]
      %v206 = vld [vmem:[%s171 + $0x58] sm:$0xf]
      %v207 = vld [vmem:[%s171 + $0x5c] sm:$0xf]
      %v208 = vld [vmem:[%s171 + $0x60] sm:$0xf]
      %v209 = vld [vmem:[%s171 + $0x64] sm:$0xf]
      %v210 = vld [vmem:[%s171 + $0x68] sm:$0xf]
      %v211 = vld [vmem:[%s171 + $0x6c] sm:$0xf]
      %v212 = vld [vmem:[%s171 + $0x70] sm:$0xf]
      %v213 = vld [vmem:[%s171 + $0x74] sm:$0xf]
      %v214 = vld [vmem:[%s171 + $0x78] sm:$0xf]
      %v215 = vld [vmem:[%s171 + $0x7c] sm:$0xf]
      %v216 = vld [vmem:[%s1] sm:$0xf]
      %v217 = vld [vmem:[%s1 + $0x4] sm:$0xf]
      %v218 = vld [vmem:[%s1 + $0x8] sm:$0xf]
      %v219 = vld [vmem:[%s1 + $0xc] sm:$0xf]
      %v220 = vld [vmem:[%s1 + $0x10] sm:$0x7]
      %v253 = vunpack.c.l.b16 %v184
      %v254 = vunpack.c.l.b16 %v185
      %v255 = vunpack.c.l.b16 %v186
      %v256 = vunpack.c.l.b16 %v187
      %v257 = vunpack.c.l.b16 %v188
      %v258 = vunpack.c.l.b16 %v189
      %v259 = vunpack.c.l.b16 %v190
      %v260 = vunpack.c.l.b16 %v191
      %v261 = vunpack.c.l.b16 %v192
      %v262 = vunpack.c.l.b16 %v193
      %v263 = vunpack.c.l.b16 %v194
      %v264 = vunpack.c.l.b16 %v195
      %v265 = vunpack.c.l.b16 %v196
      %v266 = vunpack.c.l.b16 %v197
      %v267 = vunpack.c.l.b16 %v198
      %v268 = vunpack.c.l.b16 %v199
      %v269 = vunpack.c.l.b16 %v200
      %v270 = vunpack.c.l.b16 %v201
      %v271 = vunpack.c.l.b16 %v202
      %v272 = vunpack.c.l.b16 %v203
      %v273 = vunpack.c.l.b16 %v204
      %v274 = vunpack.c.l.b16 %v205
      %v275 = vunpack.c.l.b16 %v206
      %v276 = vunpack.c.l.b16 %v207
      %v277 = vunpack.c.l.b16 %v208
      %v278 = vunpack.c.l.b16 %v209
      %v279 = vunpack.c.l.b16 %v210
      %v280 = vunpack.c.l.b16 %v211
      %v281 = vunpack.c.l.b16 %v212
      %v282 = vunpack.c.l.b16 %v213
      %v283 = vunpack.c.l.b16 %v214
      %v284 = vunpack.c.l.b16 %v215
      %v285 = vpack.c.b16 %v254, %v253
      %v286 = vpack.c.b16 %v256, %v255
      %v287 = vpack.c.b16 %v258, %v257
      %v288 = vpack.c.b16 %v260, %v259
      %v289 = vpack.c.b16 %v262, %v261
      %v290 = vpack.c.b16 %v264, %v263
      %v291 = vpack.c.b16 %v266, %v265
      %v292 = vpack.c.b16 %v268, %v267
      %v293 = vpack.c.b16 %v270, %v269
      %v294 = vpack.c.b16 %v272, %v271
      %v295 = vpack.c.b16 %v274, %v273
      %v296 = vpack.c.b16 %v276, %v275
      %v297 = vpack.c.b16 %v278, %v277
      %v298 = vpack.c.b16 %v280, %v279
      %v299 = vpack.c.b16 %v282, %v281
      %v300 = vpack.c.b16 %v284, %v283
      %v306 = vunpack.c.l.b16 %v216
      %v307 = vunpack.c.l.b16 %v217
      %v308 = vunpack.c.l.b16 %v218
      %v309 = vunpack.c.l.b16 %v219
      %v310 = vunpack.c.l.b16 %v220
      %v311 = vpack.c.b16 %v307, %v306
      %v312 = vpack.c.b16 %v309, %v308
      %v313 = vpack.c.b16 %v310, %v310
      %vm316 = vcmask 302080
      %v318 = vsel %vm316, %v285, 0
      %v321 = vsel %vm316, %v286, 0
      %v324 = vsel %vm316, %v287, 0
      %v327 = vsel %vm316, %v288, 0
      %v330 = vsel %vm316, %v289, 0
      %v333 = vsel %vm316, %v290, 0
      %v336 = vsel %vm316, %v291, 0
      %v339 = vsel %vm316, %v292, 0
      %v342 = vsel %vm316, %v293, 0
      %v345 = vsel %vm316, %v294, 0
      %v348 = vsel %vm316, %v295, 0
      %v351 = vsel %vm316, %v296, 0
      %v354 = vsel %vm316, %v297, 0
      %v357 = vsel %vm316, %v298, 0
      %v360 = vsel %vm316, %v299, 0
      %v363 = vsel %vm316, %v300, 0
      %vm365 = vcmask 1041408
      %vm366 = vcmask 1042432
      %v367 = vsel %vm365, 4294967295, 65535
      %v368 = vsel %vm366, %v367, 0
      %v370 = vand.u32 %v313, %v368
      %372 = vmatprep.subr.bf16.mxu0 0
      %373 = vmatpush1.bf16.msra.mxu0 %v311
      %374 = vmatprep.subr.bf16.mxu0 0
      %375 = vmatpush1.bf16.msra.mxu0 %v312
      %376 = vmatprep.subr.bf16.mxu0 0
      %377 = vmatpush1.bf16.msra.mxu0 %v370
      %378 = vmatprep.subr.bf16.mxu0 0
      %379 = vmatpush1.bf16.msra.mxu0 0
      %380 = vmatprep.subr.bf16.mxu0 0
      %381 = vmatpush1.bf16.msra.mxu0 0
      %382 = vmatprep.subr.bf16.mxu0 0
      %383 = vmatpush1.bf16.msra.mxu0 0
      %384 = vmatprep.subr.bf16.mxu0 0
      %385 = vmatpush1.bf16.msra.mxu0 0
      %386 = vmatprep.subr.bf16.mxu0 0
      %387 = vmatpush1.bf16.msra.mxu0 0
      %388 = vmatprep.subr.bf16.mxu0 0
      %389 = vmatpush1.bf16.msra.mxu0 0
      %390 = vmatprep.subr.bf16.mxu0 0
      %391 = vmatpush1.bf16.msra.mxu0 0
      %392 = vmatprep.subr.bf16.mxu0 0
      %393 = vmatpush1.bf16.msra.mxu0 0
      %394 = vmatprep.subr.bf16.mxu0 0
      %395 = vmatpush1.bf16.msra.mxu0 0
      %396 = vmatprep.subr.bf16.mxu0 0
      %397 = vmatpush1.bf16.msra.mxu0 0
      %398 = vmatprep.subr.bf16.mxu0 0
      %399 = vmatpush1.bf16.msra.mxu0 0
      %400 = vmatprep.subr.bf16.mxu0 0
      %401 = vmatpush1.bf16.msra.mxu0 0
      %402 = vmatprep.subr.bf16.mxu0 0
      %403 = vmatpush1.bf16.msra.mxu0 0
      %404 = vmatprep.mubr.bf16.mxu0 0
      %405 = vmatmul.mubr.bf16.gmra.mrb[0].mxu0 %v318
      %v406 = vpop.f32.mrb[0].mxu0
      %v407 = vadd.f32 0.0, %v406
      %v408 = vpop.f32.mrb[0].mxu0
      %v409 = vpop.f32.mrb[0].mxu0
      %v410 = vadd.f32 0.0, %v409
      %v411 = vpop.f32.mrb[0].mxu0
      %412 = vmatprep.mubr.bf16.mxu0 0
      %413 = vmatmul.mubr.bf16.gmra.mrb[0].mxu0 %v321
      %v414 = vpop.f32.mrb[0].mxu0
      %v415 = vadd.f32 0.0, %v414
      %v416 = vpop.f32.mrb[0].mxu0
      %v417 = vpop.f32.mrb[0].mxu0
      %v418 = vadd.f32 0.0, %v417
      %v419 = vpop.f32.mrb[0].mxu0
      %420 = vmatprep.mubr.bf16.mxu0 0
      %421 = vmatmul.mubr.bf16.gmra.mrb[0].mxu0 %v324
      %v422 = vpop.f32.mrb[0].mxu0
      %v423 = vadd.f32 0.0, %v422
      %v424 = vpop.f32.mrb[0].mxu0
      %v425 = vpop.f32.mrb[0].mxu0
      %v426 = vadd.f32 0.0, %v425
      %v427 = vpop.f32.mrb[0].mxu0
      %428 = vmatprep.mubr.bf16.mxu0 0
      %429 = vmatmul.mubr.bf16.gmra.mrb[0].mxu0 %v327
      %v430 = vpop.f32.mrb[0].mxu0
      %v431 = vadd.f32 0.0, %v430
      %v432 = vpop.f32.mrb[0].mxu0
      %v433 = vpop.f32.mrb[0].mxu0
      %v434 = vadd.f32 0.0, %v433
      %v435 = vpop.f32.mrb[0].mxu0
      %436 = vmatprep.mubr.bf16.mxu0 0
      %437 = vmatmul.mubr.bf16.gmra.mrb[0].mxu0 %v330
      %v438 = vpop.f32.mrb[0].mxu0
      %v439 = vadd.f32 0.0, %v438
      %v440 = vpop.f32.mrb[0].mxu0
      %v441 = vpop.f32.mrb[0].mxu0
      %v442 = vadd.f32 0.0, %v441
      %v443 = vpop.f32.mrb[0].mxu0
      %444 = vmatprep.mubr.bf16.mxu0 0
      %445 = vmatmul.mubr.bf16.gmra.mrb[0].mxu0 %v333
      %v446 = vpop.f32.mrb[0].mxu0
      %v447 = vadd.f32 0.0, %v446
      %v448 = vpop.f32.mrb[0].mxu0
      %v449 = vpop.f32.mrb[0].mxu0
      %v450 = vadd.f32 0.0, %v449
      %v451 = vpop.f32.mrb[0].mxu0
      %452 = vmatprep.mubr.bf16.mxu0 0
      %453 = vmatmul.mubr.bf16.gmra.mrb[0].mxu0 %v336
      %v454 = vpop.f32.mrb[0].mxu0
      %v455 = vadd.f32 0.0, %v454
      %v456 = vpop.f32.mrb[0].mxu0
      %v457 = vpop.f32.mrb[0].mxu0
      %v458 = vadd.f32 0.0, %v457
      %v459 = vpop.f32.mrb[0].mxu0
      %460 = vmatprep.mubr.bf16.mxu0 0
      %461 = vmatmul.mubr.bf16.gmra.mrb[0].mxu0 %v339
      %v462 = vpop.f32.mrb[0].mxu0
      %v463 = vadd.f32 0.0, %v462
      %v464 = vpop.f32.mrb[0].mxu0
      %v465 = vpop.f32.mrb[0].mxu0
      %v466 = vadd.f32 0.0, %v465
      %v467 = vpop.f32.mrb[0].mxu0
      %468 = vmatprep.mubr.bf16.mxu0 0
      %469 = vmatmul.mubr.bf16.gmra.mrb[0].mxu0 %v342
      %v470 = vpop.f32.mrb[0].mxu0
      %v471 = vadd.f32 0.0, %v470
      %v472 = vpop.f32.mrb[0].mxu0
      %v473 = vpop.f32.mrb[0].mxu0
      %v474 = vadd.f32 0.0, %v473
      %v475 = vpop.f32.mrb[0].mxu0
      %476 = vmatprep.mubr.bf16.mxu0 0
      %477 = vmatmul.mubr.bf16.gmra.mrb[0].mxu0 %v345
      %v478 = vpop.f32.mrb[0].mxu0
      %v479 = vadd.f32 0.0, %v478
      %v480 = vpop.f32.mrb[0].mxu0
      %v481 = vpop.f32.mrb[0].mxu0
      %v482 = vadd.f32 0.0, %v481
      %v483 = vpop.f32.mrb[0].mxu0
      %484 = vmatprep.mubr.bf16.mxu0 0
      %485 = vmatmul.mubr.bf16.gmra.mrb[0].mxu0 %v348
      %v486 = vpop.f32.mrb[0].mxu0
      %v487 = vadd.f32 0.0, %v486
      %v488 = vpop.f32.mrb[0].mxu0
      %v489 = vpop.f32.mrb[0].mxu0
      %v490 = vadd.f32 0.0, %v489
      %v491 = vpop.f32.mrb[0].mxu0
      %492 = vmatprep.mubr.bf16.mxu0 0
      %493 = vmatmul.mubr.bf16.gmra.mrb[0].mxu0 %v351
      %v494 = vpop.f32.mrb[0].mxu0
      %v495 = vadd.f32 0.0, %v494
      %v496 = vpop.f32.mrb[0].mxu0
      %v497 = vpop.f32.mrb[0].mxu0
      %v498 = vadd.f32 0.0, %v497
      %v499 = vpop.f32.mrb[0].mxu0
      %500 = vmatprep.mubr.bf16.mxu0 0
      %501 = vmatmul.mubr.bf16.gmra.mrb[0].mxu0 %v354
      %v502 = vpop.f32.mrb[0].mxu0
      %v503 = vadd.f32 0.0, %v502
      %v504 = vpop.f32.mrb[0].mxu0
      %v505 = vpop.f32.mrb[0].mxu0
      %v506 = vadd.f32 0.0, %v505
      %v507 = vpop.f32.mrb[0].mxu0
      %508 = vmatprep.mubr.bf16.mxu0 0
      %509 = vmatmul.mubr.bf16.gmra.mrb[0].mxu0 %v357
      %v510 = vpop.f32.mrb[0].mxu0
      %v511 = vadd.f32 0.0, %v510
      %v512 = vpop.f32.mrb[0].mxu0
      %v513 = vpop.f32.mrb[0].mxu0
      %v514 = vadd.f32 0.0, %v513
      %v515 = vpop.f32.mrb[0].mxu0
      %516 = vmatprep.mubr.bf16.mxu0 0
      %517 = vmatmul.mubr.bf16.gmra.mrb[0].mxu0 %v360
      %v518 = vpop.f32.mrb[0].mxu0
      %v519 = vadd.f32 0.0, %v518
      %v520 = vpop.f32.mrb[0].mxu0
      %v521 = vpop.f32.mrb[0].mxu0
      %v522 = vadd.f32 0.0, %v521
      %v523 = vpop.f32.mrb[0].mxu0
      %524 = vmatprep.mubr.bf16.mxu0 0
      %525 = vmatmul.mubr.bf16.gmra.mrb[0].mxu0 %v363
      %v526 = vpop.f32.mrb[0].mxu0
      %v527 = vadd.f32 0.0, %v526
      %v528 = vpop.f32.mrb[0].mxu0
      %v529 = vpop.f32.mrb[0].mxu0
      %v530 = vadd.f32 0.0, %v529
      %v531 = vpop.f32.mrb[0].mxu0
      %532 = vdwg.mxu0
      %v533 = vpack.c.bf16 %v410, %v407
      %v534 = vpack.c.bf16 %v418, %v415
      %v535 = vpack.c.bf16 %v426, %v423
      %v536 = vpack.c.bf16 %v434, %v431
      %v537 = vpack.c.bf16 %v442, %v439
      %v538 = vpack.c.bf16 %v450, %v447
      %v539 = vpack.c.bf16 %v458, %v455
      %v540 = vpack.c.bf16 %v466, %v463
      %v541 = vpack.c.bf16 %v474, %v471
      %v542 = vpack.c.bf16 %v482, %v479
      %v543 = vpack.c.bf16 %v490, %v487
      %v544 = vpack.c.bf16 %v498, %v495
      %v545 = vpack.c.bf16 %v506, %v503
      %v546 = vpack.c.bf16 %v514, %v511
      %v547 = vpack.c.bf16 %v522, %v519
      %v548 = vpack.c.bf16 %v530, %v527
      %v565 = vunpack.c.l.b16 %v533
      %v566 = vunpack.c.h.b16 %v533
      %v567 = vunpack.c.l.b16 %v534
      %v568 = vunpack.c.h.b16 %v534
      %v569 = vunpack.c.l.b16 %v535
      %v570 = vunpack.c.h.b16 %v535
      %v571 = vunpack.c.l.b16 %v536
      %v572 = vunpack.c.h.b16 %v536
      %v573 = vunpack.c.l.b16 %v537
      %v574 = vunpack.c.h.b16 %v537
      %v575 = vunpack.c.l.b16 %v538
      %v576 = vunpack.c.h.b16 %v538
      %v577 = vunpack.c.l.b16 %v539
      %v578 = vunpack.c.h.b16 %v539
      %v579 = vunpack.c.l.b16 %v540
      %v580 = vunpack.c.h.b16 %v540
      %v581 = vunpack.c.l.b16 %v541
      %v582 = vunpack.c.h.b16 %v541
      %v583 = vunpack.c.l.b16 %v542
      %v584 = vunpack.c.h.b16 %v542
      %v585 = vunpack.c.l.b16 %v543
      %v586 = vunpack.c.h.b16 %v543
      %v587 = vunpack.c.l.b16 %v544
      %v588 = vunpack.c.h.b16 %v544
      %v589 = vunpack.c.l.b16 %v545
      %v590 = vunpack.c.h.b16 %v545
      %v591 = vunpack.c.l.b16 %v546
      %v592 = vunpack.c.h.b16 %v546
      %v593 = vunpack.c.l.b16 %v547
      %v594 = vunpack.c.h.b16 %v547
      %v595 = vunpack.c.l.b16 %v548
      %v596 = vunpack.c.h.b16 %v548
      %v597 = vpack.c.b16 %v565, %v565
      %v598 = vpack.c.b16 %v566, %v566
      %v599 = vpack.c.b16 %v567, %v567
      %v600 = vpack.c.b16 %v568, %v568
      %v601 = vpack.c.b16 %v569, %v569
      %v602 = vpack.c.b16 %v570, %v570
      %v603 = vpack.c.b16 %v571, %v571
      %v604 = vpack.c.b16 %v572, %v572
      %v605 = vpack.c.b16 %v573, %v573
      %v606 = vpack.c.b16 %v574, %v574
      %v607 = vpack.c.b16 %v575, %v575
      %v608 = vpack.c.b16 %v576, %v576
      %v609 = vpack.c.b16 %v577, %v577
      %v610 = vpack.c.b16 %v578, %v578
      %v611 = vpack.c.b16 %v579, %v579
      %v612 = vpack.c.b16 %v580, %v580
      %v613 = vpack.c.b16 %v581, %v581
      %v614 = vpack.c.b16 %v582, %v582
      %v615 = vpack.c.b16 %v583, %v583
      %v616 = vpack.c.b16 %v584, %v584
      %v617 = vpack.c.b16 %v585, %v585
      %v618 = vpack.c.b16 %v586, %v586
      %v619 = vpack.c.b16 %v587, %v587
      %v620 = vpack.c.b16 %v588, %v588
      %v621 = vpack.c.b16 %v589, %v589
      %v622 = vpack.c.b16 %v590, %v590
      %v623 = vpack.c.b16 %v591, %v591
      %v624 = vpack.c.b16 %v592, %v592
      %v625 = vpack.c.b16 %v593, %v593
      %v626 = vpack.c.b16 %v594, %v594
      %v627 = vpack.c.b16 %v595, %v595
      %v628 = vpack.c.b16 %v596, %v596
      %vm661 = vcmask 60416
      %662 = vst.msk [vmem:[%s181] sm:$0xf] %vm661, %v597
      %663 = vst.msk [vmem:[%s181 + $0x4] sm:$0xf] %vm661, %v598
      %664 = vst.msk [vmem:[%s181 + $0x8] sm:$0xf] %vm661, %v599
      %665 = vst.msk [vmem:[%s181 + $0xc] sm:$0xf] %vm661, %v600
      %666 = vst.msk [vmem:[%s181 + $0x10] sm:$0xf] %vm661, %v601
      %667 = vst.msk [vmem:[%s181 + $0x14] sm:$0xf] %vm661, %v602
      %668 = vst.msk [vmem:[%s181 + $0x18] sm:$0xf] %vm661, %v603
      %669 = vst.msk [vmem:[%s181 + $0x1c] sm:$0xf] %vm661, %v604
      %670 = vst.msk [vmem:[%s181 + $0x20] sm:$0xf] %vm661, %v605
      %671 = vst.msk [vmem:[%s181 + $0x24] sm:$0xf] %vm661, %v606
      %672 = vst.msk [vmem:[%s181 + $0x28] sm:$0xf] %vm661, %v607
      %673 = vst.msk [vmem:[%s181 + $0x2c] sm:$0xf] %vm661, %v608
      %674 = vst.msk [vmem:[%s181 + $0x30] sm:$0xf] %vm661, %v609
      %675 = vst.msk [vmem:[%s181 + $0x34] sm:$0xf] %vm661, %v610
      %676 = vst.msk [vmem:[%s181 + $0x38] sm:$0xf] %vm661, %v611
      %677 = vst.msk [vmem:[%s181 + $0x3c] sm:$0xf] %vm661, %v612
      %678 = vst.msk [vmem:[%s181 + $0x40] sm:$0xf] %vm661, %v613
      %679 = vst.msk [vmem:[%s181 + $0x44] sm:$0xf] %vm661, %v614
      %680 = vst.msk [vmem:[%s181 + $0x48] sm:$0xf] %vm661, %v615
      %681 = vst.msk [vmem:[%s181 + $0x4c] sm:$0xf] %vm661, %v616
      %682 = vst.msk [vmem:[%s181 + $0x50] sm:$0xf] %vm661, %v617
      %683 = vst.msk [vmem:[%s181 + $0x54] sm:$0xf] %vm661, %v618
      %684 = vst.msk [vmem:[%s181 + $0x58] sm:$0xf] %vm661, %v619
      %685 = vst.msk [vmem:[%s181 + $0x5c] sm:$0xf] %vm661, %v620
      %686 = vst.msk [vmem:[%s181 + $0x60] sm:$0xf] %vm661, %v621
      %687 = vst.msk [vmem:[%s181 + $0x64] sm:$0xf] %vm661, %v622
      %688 = vst.msk [vmem:[%s181 + $0x68] sm:$0xf] %vm661, %v623
      %689 = vst.msk [vmem:[%s181 + $0x6c] sm:$0xf] %vm661, %v624
      %690 = vst.msk [vmem:[%s181 + $0x70] sm:$0xf] %vm661, %v625
      %691 = vst.msk [vmem:[%s181 + $0x74] sm:$0xf] %vm661, %v626
      %692 = vst.msk [vmem:[%s181 + $0x78] sm:$0xf] %vm661, %v627
      %693 = vst.msk [vmem:[%s181 + $0x7c] sm:$0xf] %vm661, %v628
      %s694 = smul.u32 32, %s18
      %p695 = scmp.lt.s32.totalorder %s17, 1
      %s696 = scalar_select %p695, %s17, 1
      %p697 = scmp.lt.s32.totalorder %s694, 31
      %s698 = scalar_select %p697, %s694, 31
      %s699 = smul.addr %s696, 32
      %s700 = sadd.s32 %s698, %s699
      %s701 = smul.addr %s700, 4
      %s702 = scalar_lea.vmem %s2, %s701
      // Predicated region
      $region29: #{segmentation_head_2d.2} parent=27 // pred_check
        %p703 = pneg %p94
      $region30: #{segmentation_head_2d.2} parent=27 // pred_check_branch
        %705 = sbr.rel (%p703) target = $region32
      $region31: #{segmentation_head_2d.2} parent=27 // pred_region
        %s706 = smul.u32 32, %s18
      $region32: #{segmentation_head_2d.2} parent=27 // pred_fallthru
        _
    $region28: #{segmentation_head_2d.2} parent=5 // pred_fallthru
      _
    %p707 = scmp.le.s32.totalorder 2, %s8
    // Predicated region
    $region33: #{segmentation_head_2d.2} parent=5 // pred_check
      %p708 = pneg %p707
    $region34: #{segmentation_head_2d.2} parent=5 // pred_check_branch
      %710 = sbr.rel (%p708) target = $region36
    $region35: #{segmentation_head_2d.2} parent=5 // pred_region
      %s711 = ssub.s32 %s8, 2
      // Predicated region
      $region37: #{segmentation_head_2d.2} parent=35 // pred_check
        %p712 = pneg %p100
      $region38: #{segmentation_head_2d.2} parent=35 // pred_check_branch
        %714 = sbr.rel (%p712) target = $region40
      $region39: #{segmentation_head_2d.2} parent=35 // pred_region
        %s715 = smul.u32 32, %s20
        %p716 = scmp.lt.s32.totalorder %s19, 1
        %s717 = scalar_select %p716, %s19, 1
        %p718 = scmp.lt.s32.totalorder %s715, 31
        %s719 = scalar_select %p718, %s715, 31
        %s720 = smul.addr %s717, 32
        %s721 = sadd.s32 %s719, %s720
        %s722 = smul.addr %s721, 4
        %s723 = scalar_lea.vmem %s2, %s722
      $region40: #{segmentation_head_2d.2} parent=35 // pred_fallthru
        _
    $region36: #{segmentation_head_2d.2} parent=5 // pred_fallthru
      _
  $region6: #{segmentation_head_2d.2} parent=0 // loop_footer
    %s12 = sadd.s32 1, %s8
  $region7: #{segmentation_head_2d.2} parent=0 // loop_footer_branch
    %7 = sbr.rel target = $region3
  $region8: #{segmentation_head_2d.2} parent=0 // loop_exit
    _

// kernel: segmentation_head_2d.3
$region0: #{segmentation_head_2d.3}
  #allocation0 [shape = 'u32[]', space=smem, size = 0x4, offset = 0x4, fixed_abs, tag = 'smem constant byte address 0x4 - core index']
  #allocation1 [shape = 'u32[144,128]{1,0:T(1,128)}', space=vmem, size = 0x12000, scoped, tag = 'internal scratch']
  %s0 = inlined_call_operand.vmem [shape: bf16[2,16,128], index: 0, kind: input, shape index: {}]
  %s1 = inlined_call_operand.vmem [shape: bf16[32,16], index: 1, kind: input, shape index: {}]
  %s2 = inlined_call_operand.vmem [shape: bf16[128,256], index: 2, kind: input, shape index: {}]
  %s3 = inlined_call_operand.vmem [shape: f32[2,32,256], index: 3, kind: output, shape index: {}]
  %s4 = sld [smem:[#allocation0]]
  $region45: #{segmentation_head_2d.3} parent=0
    _
  %s6 = ssub.s32 1, %s4
  %s7 = scalar_select 0, %s6, %s4
  loop: start=0, step=1, limit=4
  $region2: #{segmentation_head_2d.3} parent=0 // loop_pre_header
    _
  $region3: #{segmentation_head_2d.3} parent=0 // loop_header
    %s9 = sphi 0, %s13
    %p10 = scmp.ge.s32.totalorder %s9, 4
    %s19 = sphi 0, %s21
    %s22 = sphi 0, %s19
    %s23 = sphi 0, %s22
    %s39 = sphi 0, %s23
    %s43 = sphi 0, %s43
    %s45 = sphi 0, %s43
    %s46 = sphi 0, %s45
    %s60 = sphi 0, %s46
    %s64 = sphi 0, %s64
    %s66 = sphi 0, %s64
    %s67 = sphi 0, %s66
    %s81 = sphi 0, %s67
    %s87 = sphi 0, %s89
    %s90 = sphi 0, %s87
    %s91 = sphi 0, %s90
    %s107 = sphi 0, %s91
  $region4: #{segmentation_head_2d.3} parent=0 // loop_header_branch
    %12 = sbr.rel (%p10) target = $region8
  $region5: #{segmentation_head_2d.3} parent=0 // loop_body
    %s14 = ssub.s32 %s9, 1
    %s15 = ssub.s32 %s9, 2
    %s16 = sadd.s32 %s9, 1
    %s17 = ssub.s32 %s9, %s16
    %p18 = scmp.eq.s32.totalorder %s17, 0
    %s20 = sadd.s32 %s19, 1
    %s21 = scalar_select %p18, %s19, %s20
    %p24 = pneg %p18
    %p25 = scmp.eq.s32.totalorder %s9, 1
    %p26 = por %p24, %p25
    %p27 = scmp.ne.s32.totalorder %s19, %s22
    %p28 = scmp.eq.s32.totalorder %s9, 0
    %p29 = por %p27, %p28
    %p30 = scmp.ne.s32.totalorder %s19, %s22
    %p31 = scmp.eq.s32.totalorder %s14, 1
    %p32 = por %p30, %p31
    %p33 = scmp.ne.s32.totalorder %s22, %s23
    %p34 = scmp.eq.s32.totalorder %s14, 0
    %p35 = por %p33, %p34
    %p36 = scmp.ne.s32.totalorder %s22, %s23
    %p37 = scmp.eq.s32.totalorder %s15, 1
    %p38 = por %p36, %p37
    %p40 = scmp.ne.s32.totalorder %s23, %s39
    %p41 = scmp.eq.s32.totalorder %s15, 0
    %p42 = por %p40, %p41
    %s44 = sadd.s32 %s43, 1
    %p47 = scmp.eq.s32.totalorder %s9, 1
    %p48 = scmp.ne.s32.totalorder %s43, %s45
    %p49 = scmp.eq.s32.totalorder %s9, 0
    %p50 = por %p48, %p49
    %p51 = scmp.ne.s32.totalorder %s43, %s45
    %p52 = scmp.eq.s32.totalorder %s14, 1
    %p53 = por %p51, %p52
    %p54 = scmp.ne.s32.totalorder %s45, %s46
    %p55 = scmp.eq.s32.totalorder %s14, 0
    %p56 = por %p54, %p55
    %p57 = scmp.ne.s32.totalorder %s45, %s46
    %p58 = scmp.eq.s32.totalorder %s15, 1
    %p59 = por %p57, %p58
    %p61 = scmp.ne.s32.totalorder %s46, %s60
    %p62 = scmp.eq.s32.totalorder %s15, 0
    %p63 = por %p61, %p62
    %s65 = sadd.s32 %s64, 1
    %p68 = scmp.eq.s32.totalorder %s9, 1
    %p69 = scmp.ne.s32.totalorder %s64, %s66
    %p70 = scmp.eq.s32.totalorder %s9, 0
    %p71 = por %p69, %p70
    %p72 = scmp.ne.s32.totalorder %s64, %s66
    %p73 = scmp.eq.s32.totalorder %s14, 1
    %p74 = por %p72, %p73
    %p75 = scmp.ne.s32.totalorder %s66, %s67
    %p76 = scmp.eq.s32.totalorder %s14, 0
    %p77 = por %p75, %p76
    %p78 = scmp.ne.s32.totalorder %s66, %s67
    %p79 = scmp.eq.s32.totalorder %s15, 1
    %p80 = por %p78, %p79
    %p82 = scmp.ne.s32.totalorder %s67, %s81
    %p83 = scmp.eq.s32.totalorder %s15, 0
    %p84 = por %p82, %p83
    %s85 = ssub.s32 %s9, %s16
    %p86 = scmp.eq.s32.totalorder %s85, 0
    %s88 = sadd.s32 %s87, 1
    %s89 = scalar_select %p86, %s87, %s88
    %p92 = pneg %p86
    %p93 = scmp.eq.s32.totalorder %s9, 1
    %p94 = por %p92, %p93
    %p95 = scmp.ne.s32.totalorder %s87, %s90
    %p96 = scmp.eq.s32.totalorder %s9, 0
    %p97 = por %p95, %p96
    %p98 = scmp.ne.s32.totalorder %s87, %s90
    %p99 = scmp.eq.s32.totalorder %s14, 1
    %p100 = por %p98, %p99
    %p101 = scmp.ne.s32.totalorder %s90, %s91
    %p102 = scmp.eq.s32.totalorder %s14, 0
    %p103 = por %p101, %p102
    %p104 = scmp.ne.s32.totalorder %s90, %s91
    %p105 = scmp.eq.s32.totalorder %s15, 1
    %p106 = por %p104, %p105
    %p108 = scmp.ne.s32.totalorder %s91, %s107
    %p109 = scmp.eq.s32.totalorder %s15, 0
    %p110 = por %p108, %p109
    %p111 = scmp.le.s32.totalorder 1, %s9
    %p112 = scmp.lt.s32.totalorder %s9, 3
    %p113 = pnand %p111, %p112
    %p114 = pneg %p113
    // Predicated region
    $region9: #{segmentation_head_2d.3} parent=5 // pred_check
      _
    $region10: #{segmentation_head_2d.3} parent=5 // pred_check_branch
      %116 = sbr.rel (%p113) target = $region12
    $region11: #{segmentation_head_2d.3} parent=5 // pred_region
      %s117 = ssub.s32 %s9, 1
      // Predicated region
      $region13: #{segmentation_head_2d.3} parent=11 // pred_check
        %p118 = pneg %p56
      $region14: #{segmentation_head_2d.3} parent=11 // pred_check_branch
        %120 = sbr.rel (%p118) target = $region16
      $region15: #{segmentation_head_2d.3} parent=11 // pred_region
        _
      $region16: #{segmentation_head_2d.3} parent=11 // pred_fallthru
        _
      // Predicated region
      $region17: #{segmentation_head_2d.3} parent=11 // pred_check
        %p121 = pneg %p77
      $region18: #{segmentation_head_2d.3} parent=11 // pred_check_branch
        %123 = sbr.rel (%p121) target = $region20
      $region19: #{segmentation_head_2d.3} parent=11 // pred_region
        _
      $region20: #{segmentation_head_2d.3} parent=11 // pred_fallthru
        _
    $region12: #{segmentation_head_2d.3} parent=5 // pred_fallthru
      _
    %p124 = scmp.lt.s32.totalorder %s9, 2
    // Predicated region
    $region21: #{segmentation_head_2d.3} parent=5 // pred_check
      %p125 = pneg %p124
    $region22: #{segmentation_head_2d.3} parent=5 // pred_check_branch
      %127 = sbr.rel (%p125) target = $region24
    $region23: #{segmentation_head_2d.3} parent=5 // pred_region
      // Predicated region
      $region25: #{segmentation_head_2d.3} parent=23 // pred_check
        %p128 = pneg %p29
      $region26: #{segmentation_head_2d.3} parent=23 // pred_check_branch
        %130 = sbr.rel (%p128) target = $region28
      $region27: #{segmentation_head_2d.3} parent=23 // pred_region
        %p131 = scmp.lt.s32.totalorder %s9, 1
        %s132 = scalar_select %p131, %s9, 1
        %s133 = smul.addr %s132, 2
        %s134 = smul.addr %s133, 4
        %s135 = scalar_lea.vmem %s0, %s134
      $region28: #{segmentation_head_2d.3} parent=23 // pred_fallthru
        _
    $region24: #{segmentation_head_2d.3} parent=5 // pred_fallthru
      _
    %p136 = scmp.le.s32.totalorder 1, %s9
    %p137 = scmp.lt.s32.totalorder %s9, 3
    %p138 = pnand %p136, %p137
    %p139 = pneg %p138
    // Predicated region
    $region29: #{segmentation_head_2d.3} parent=5 // pred_check
      _
    $region30: #{segmentation_head_2d.3} parent=5 // pred_check_branch
      %141 = sbr.rel (%p138) target = $region32
    $region31: #{segmentation_head_2d.3} parent=5 // pred_region
      %s142 = ssub.s32 %s9, 1
      %p143 = scmp.lt.s32.totalorder %s14, 1
      %s144 = scalar_select %p143, %s14, 1
      %s145 = smul.addr %s144, 2
      %s146 = smul.addr %s145, 4
      %s147 = scalar_lea.vmem %s0, %s146
      %p148 = pneg %p35
      %p149 = pneg %p32
      %p150 = pneg %p56
      %p151 = pneg %p53
      %p152 = pneg %p77
      %p153 = pneg %p74
      %p154 = pneg %p103
      %p155 = pneg %p100
      %p156 = scmp.lt.s32.totalorder %s14, 1
      %s157 = scalar_select %p156, %s14, 1
      %s158 = smul.addr %s157, 8
      %s159 = smul.addr %s158, 8
      %s160 = scalar_lea.vmem %s3, %s159
      %p161 = scmp.lt.s32.totalorder %s14, 1
      %s162 = scalar_select %p161, %s14, 1
      %s163 = smul.addr %s162, 2
      %s164 = smul.addr %s163, 4
      %s165 = scalar_lea.vmem %s0, %s164
      %p166 = scmp.lt.s32.totalorder %s14, 1
      %s167 = scalar_select %p166, %s14, 1
      %s168 = smul.addr %s167, 8
      %s169 = smul.addr %s168, 8
      %s170 = scalar_lea.vmem %s3, %s169
      %v172 = vld [vmem:[%s1] sm:$0xf]
      %v173 = vld [vmem:[%s1 + $0x4] sm:$0xf]
      %v174 = vld [vmem:[%s1 + $0x8] sm:$0xf]
      %v175 = vld [vmem:[%s1 + $0xc] sm:$0xf]
      %v176 = vld [vmem:[%s165] sm:$0xf]
      %v177 = vld [vmem:[%s165 + $0x4] sm:$0xf]
      %v182 = vunpack.c.l.b16 %v172
      %v183 = vunpack.c.l.b16 %v173
      %v184 = vunpack.c.l.b16 %v174
      %v185 = vunpack.c.l.b16 %v175
      %v186 = vpack.c.b16 %v183, %v182
      %v187 = vpack.c.b16 %v185, %v184
      %v190 = vunpack.c.l.b16 %v176
      %v191 = vunpack.c.l.b16 %v177
      %v192 = vpack.c.b16 %v191, %v190
      %vm194 = vcmask 130048
      %v196 = vsel %vm194, %v186, 0
      %v199 = vsel %vm194, %v187, 0
      %201 = vmatprep.subr.bf16.mxu0 0
      %202 = vmatpush1.bf16.msra.mxu0 %v192
      %203 = vmatprep.subr.bf16.mxu0 0
      %204 = vmatpush1.bf16.msra.mxu0 0
      %205 = vmatprep.subr.bf16.mxu0 0
      %206 = vmatpush1.bf16.msra.mxu0 0
      %207 = vmatprep.subr.bf16.mxu0 0
      %208 = vmatpush1.bf16.msra.mxu0 0
      %209 = vmatprep.subr.bf16.mxu0 0
      %210 = vmatpush1.bf16.msra.mxu0 0
      %211 = vmatprep.subr.bf16.mxu0 0
      %212 = vmatpush1.bf16.msra.mxu0 0
      %213 = vmatprep.subr.bf16.mxu0 0
      %214 = vmatpush1.bf16.msra.mxu0 0
      %215 = vmatprep.subr.bf16.mxu0 0
      %216 = vmatpush1.bf16.msra.mxu0 0
      %217 = vmatprep.subr.bf16.mxu0 0
      %218 = vmatpush1.bf16.msra.mxu0 0
      %219 = vmatprep.subr.bf16.mxu0 0
      %220 = vmatpush1.bf16.msra.mxu0 0
      %221 = vmatprep.subr.bf16.mxu0 0
      %222 = vmatpush1.bf16.msra.mxu0 0
      %223 = vmatprep.subr.bf16.mxu0 0
      %224 = vmatpush1.bf16.msra.mxu0 0
      %225 = vmatprep.subr.bf16.mxu0 0
      %226 = vmatpush1.bf16.msra.mxu0 0
      %227 = vmatprep.subr.bf16.mxu0 0
      %228 = vmatpush1.bf16.msra.mxu0 0
      %229 = vmatprep.subr.bf16.mxu0 0
      %230 = vmatpush1.bf16.msra.mxu0 0
      %231 = vmatprep.subr.bf16.mxu0 0
      %232 = vmatpush1.bf16.msra.mxu0 0
      %233 = vmatprep.mubr.bf16.mxu0 0
      %234 = vmatmul.mubr.bf16.gmra.mrb[0].mxu0 %v196
      %v235 = vpop.f32.mrb[0].mxu0
      %v236 = vadd.f32 0.0, %v235
      %v237 = vpop.f32.mrb[0].mxu0
      %v238 = vpop.f32.mrb[0].mxu0
      %v239 = vadd.f32 0.0, %v238
      %v240 = vpop.f32.mrb[0].mxu0
      %241 = vmatprep.mubr.bf16.mxu0 0
      %242 = vmatmul.mubr.bf16.gmra.mrb[0].mxu0 %v199
      %v243 = vpop.f32.mrb[0].mxu0
      %v244 = vadd.f32 0.0, %v243
      %v245 = vpop.f32.mrb[0].mxu0
      %v246 = vpop.f32.mrb[0].mxu0
      %v247 = vadd.f32 0.0, %v246
      %v248 = vpop.f32.mrb[0].mxu0
      %249 = vdwg.mxu0
      %v250 = vpack.c.bf16 %v239, %v236
      %v251 = vpack.c.bf16 %v247, %v244
      %v252 = vld [vmem:[%s2] sm:$0xff]
      %v253 = vld [vmem:[%s2 + $0x8] sm:$0xff]
      %v254 = vld [vmem:[%s2 + $0x10] sm:$0xff]
      %v255 = vld [vmem:[%s2 + $0x18] sm:$0xff]
      %v256 = vld [vmem:[%s2 + $0x20] sm:$0xff]
      %v257 = vld [vmem:[%s2 + $0x28] sm:$0xff]
      %v258 = vld [vmem:[%s2 + $0x30] sm:$0xff]
      %v259 = vld [vmem:[%s2 + $0x38] sm:$0xff]
      %v260 = vld [vmem:[%s2 + $0x40] sm:$0xff]
      %v261 = vld [vmem:[%s2 + $0x48] sm:$0xff]
      %v262 = vld [vmem:[%s2 + $0x50] sm:$0xff]
      %v263 = vld [vmem:[%s2 + $0x58] sm:$0xff]
      %v264 = vld [vmem:[%s2 + $0x60] sm:$0xff]
      %v265 = vld [vmem:[%s2 + $0x68] sm:$0xff]
      %v266 = vld [vmem:[%s2 + $0x70] sm:$0xff]
      %v267 = vld [vmem:[%s2 + $0x78] sm:$0xff]
      %v284 = vunpack.c.l.b16 %v252
      %v285 = vunpack.c.h.b16 %v252
      %v286 = vunpack.c.l.b16 %v253
      %v287 = vunpack.c.h.b16 %v253
      %v288 = vunpack.c.l.b16 %v254
      %v289 = vunpack.c.h.b16 %v254
      %v290 = vunpack.c.l.b16 %v255
      %v291 = vunpack.c.h.b16 %v255
      %v292 = vunpack.c.l.b16 %v256
      %v293 = vunpack.c.h.b16 %v256
      %v294 = vunpack.c.l.b16 %v257
      %v295 = vunpack.c.h.b16 %v257
      %v296 = vunpack.c.l.b16 %v258
      %v297 = vunpack.c.h.b16 %v258
      %v298 = vunpack.c.l.b16 %v259
      %v299 = vunpack.c.h.b16 %v259
      %v300 = vunpack.c.l.b16 %v260
      %v301 = vunpack.c.h.b16 %v260
      %v302 = vunpack.c.l.b16 %v261
      %v303 = vunpack.c.h.b16 %v261
      %v304 = vunpack.c.l.b16 %v262
      %v305 = vunpack.c.h.b16 %v262
      %v306 = vunpack.c.l.b16 %v263
      %v307 = vunpack.c.h.b16 %v263
      %v308 = vunpack.c.l.b16 %v264
      %v309 = vunpack.c.h.b16 %v264
      %v310 = vunpack.c.l.b16 %v265
      %v311 = vunpack.c.h.b16 %v265
      %v312 = vunpack.c.l.b16 %v266
      %v313 = vunpack.c.h.b16 %v266
      %v314 = vunpack.c.l.b16 %v267
      %v315 = vunpack.c.h.b16 %v267
      %v316 = vpack.c.b16 %v286, %v284
      %v317 = vpack.c.b16 %v287, %v285
      %v318 = vpack.c.b16 %v290, %v288
      %v319 = vpack.c.b16 %v291, %v289
      %v320 = vpack.c.b16 %v294, %v292
      %v321 = vpack.c.b16 %v295, %v293
      %v322 = vpack.c.b16 %v298, %v296
      %v323 = vpack.c.b16 %v299, %v297
      %v324 = vpack.c.b16 %v302, %v300
      %v325 = vpack.c.b16 %v303, %v301
      %v326 = vpack.c.b16 %v306, %v304
      %v327 = vpack.c.b16 %v307, %v305
      %v328 = vpack.c.b16 %v310, %v308
      %v329 = vpack.c.b16 %v311, %v309
      %v330 = vpack.c.b16 %v314, %v312
      %v331 = vpack.c.b16 %v315, %v313
      %348 = vmatprep.subr.bf16.mxu0 %v317
      %349 = vmatpush1.bf16.msra.mxu0 %v316
      %350 = vmatprep.subr.bf16.mxu0 %v319
      %351 = vmatpush1.bf16.msra.mxu0 %v318
      %352 = vmatprep.subr.bf16.mxu0 %v321
      %353 = vmatpush1.bf16.msra.mxu0 %v320
      %354 = vmatprep.subr.bf16.mxu0 %v323
      %355 = vmatpush1.bf16.msra.mxu0 %v322
      %356 = vmatprep.subr.bf16.mxu0 %v325
      %357 = vmatpush1.bf16.msra.mxu0 %v324
      %358 = vmatprep.subr.bf16.mxu0 %v327
      %359 = vmatpush1.bf16.msra.mxu0 %v326
      %360 = vmatprep.subr.bf16.mxu0 %v329
      %361 = vmatpush1.bf16.msra.mxu0 %v328
      %362 = vmatprep.subr.bf16.mxu0 %v331
      %363 = vmatpush1.bf16.msra.mxu0 %v330
      %364 = vmatprep.subr.bf16.mxu0 0
      %365 = vmatpush1.bf16.msra.mxu0 0
      %366 = vmatprep.subr.bf16.mxu0 0
      %367 = vmatpush1.bf16.msra.mxu0 0
      %368 = vmatprep.subr.bf16.mxu0 0
      %369 = vmatpush1.bf16.msra.mxu0 0
      %370 = vmatprep.subr.bf16.mxu0 0
      %371 = vmatpush1.bf16.msra.mxu0 0
      %372 = vmatprep.subr.bf16.mxu0 0
      %373 = vmatpush1.bf16.msra.mxu0 0
      %374 = vmatprep.subr.bf16.mxu0 0
      %375 = vmatpush1.bf16.msra.mxu0 0
      %376 = vmatprep.subr.bf16.mxu0 0
      %377 = vmatpush1.bf16.msra.mxu0 0
      %378 = vmatprep.subr.bf16.mxu0 0
      %379 = vmatpush1.bf16.msra.mxu0 0
      %380 = vmatprep.mubr.bf16.mxu0 0
      %381 = vmatmul.mubr.bf16.gmra.mrb[0].mxu0 %v250
      %v382 = vpop.f32.mrb[0].mxu0
      %v383 = vadd.f32 0.0, %v382
      %v384 = vpop.f32.mrb[0].mxu0
      %v385 = vadd.f32 0.0, %v384
      %v386 = vpop.f32.mrb[0].mxu0
      %v387 = vadd.f32 0.0, %v386
      %v388 = vpop.f32.mrb[0].mxu0
      %v389 = vadd.f32 0.0, %v388
      %390 = vmatprep.mubr.bf16.mxu0 0
      %391 = vmatmul.mubr.bf16.gmra.mrb[0].mxu0 %v251
      %v392 = vpop.f32.mrb[0].mxu0
      %v393 = vadd.f32 0.0, %v392
      %v394 = vpop.f32.mrb[0].mxu0
      %v395 = vadd.f32 0.0, %v394
      %v396 = vpop.f32.mrb[0].mxu0
      %v397 = vadd.f32 0.0, %v396
      %v398 = vpop.f32.mrb[0].mxu0
      %v399 = vadd.f32 0.0, %v398
      %400 = vdwg.mxu0
      %401 = vst [vmem:[%s170] sm:$0xff] %v383
      %402 = vst [vmem:[%s170 + $0x8] sm:$0xff] %v385
      %403 = vst [vmem:[%s170 + $0x10] sm:$0xff] %v387
      %404 = vst [vmem:[%s170 + $0x18] sm:$0xff] %v389
      %405 = vst [vmem:[%s170 + $0x20] sm:$0xff] %v393
      %406 = vst [vmem:[%s170 + $0x28] sm:$0xff] %v395
      %407 = vst [vmem:[%s170 + $0x30] sm:$0xff] %v397
      %408 = vst [vmem:[%s170 + $0x38] sm:$0xff] %v399
      %p409 = scmp.lt.s32.totalorder %s14, 1
      %s410 = scalar_select %p409, %s14, 1
      %s411 = smul.addr %s410, 8
      %s412 = smul.addr %s411, 8
      %s413 = scalar_lea.vmem %s3, %s412
      // Predicated region
      $region33: #{segmentation_head_2d.3} parent=31 // pred_check
        %p414 = pneg %p100
      $region34: #{segmentation_head_2d.3} parent=31 // pred_check_branch
        %416 = sbr.rel (%p414) target = $region36
      $region35: #{segmentation_head_2d.3} parent=31 // pred_region
        _
      $region36: #{segmentation_head_2d.3} parent=31 // pred_fallthru
        _
    $region32: #{segmentation_head_2d.3} parent=5 // pred_fallthru
      _
    %p417 = scmp.le.s32.totalorder 2, %s9
    // Predicated region
    $region37: #{segmentation_head_2d.3} parent=5 // pred_check
      %p418 = pneg %p417
    $region38: #{segmentation_head_2d.3} parent=5 // pred_check_branch
      %420 = sbr.rel (%p418) target = $region40
    $region39: #{segmentation_head_2d.3} parent=5 // pred_region
      %s421 = ssub.s32 %s9, 2
      // Predicated region
      $region41: #{segmentation_head_2d.3} parent=39 // pred_check
        %p422 = pneg %p106
      $region42: #{segmentation_head_2d.3} parent=39 // pred_check_branch
        %424 = sbr.rel (%p422) target = $region44
      $region43: #{segmentation_head_2d.3} parent=39 // pred_region
        %p425 = scmp.lt.s32.totalorder %s15, 1
        %s426 = scalar_select %p425, %s15, 1
        %s427 = smul.addr %s426, 8
        %s428 = smul.addr %s427, 8
        %s429 = scalar_lea.vmem %s3, %s428
      $region44: #{segmentation_head_2d.3} parent=39 // pred_fallthru
        _
    $region40: #{segmentation_head_2d.3} parent=5 // pred_fallthru
      _
  $region6: #{segmentation_head_2d.3} parent=0 // loop_footer
    %s13 = sadd.s32 1, %s9
  $region7: #{segmentation_head_2d.3} parent=0 // loop_footer_branch
    %8 = sbr.rel target = $region3
  $region8: #{segmentation_head_2d.3} parent=0 // loop_exit
    _

</llo_original>
